<compile_context>
chip_gen: v7x
topology: tpu7x:2x2x1
jax: 0.10.0
libtpu: 0.0.40
codegen_flags: <defaults>
</compile_context>

<pallas_src>
import functools

import jax
import jax.numpy as jnp
from jax.experimental import pallas as pl
from jax.experimental.pallas import tpu as pltpu

SQRT_HALF = 0.7071067811865476
LANE = 128


def _gelu_exact(x):
    # PyTorch F.gelu default = exact erf-based GELU.
    return 0.5 * x * (1.0 + jax.lax.erf(x * SQRT_HALF))


def _round_up(x, m):
    return ((x + m - 1) // m) * m


def _choose_tiling(n):
    """Pad node count and pick (dst, src) tile sizes.

    Sized against the smallest VMEM budget (v7x: 32 MiB scoped / 64 MiB
    physical); v5e/v6e have more headroom and simply run the same config.
    Guarantees >= 2 dst tiles once n_pad >= 256 so megacore can split rows.
    """
    n_pad = _round_up(max(n, 1), LANE)
    if n_pad <= LANE:
        return n_pad, n_pad, n_pad                  # tiny graph: one tile
    if n_pad <= 2048:
        n_pad = _round_up(n, 2 * LANE)
        return n_pad, n_pad // 2, n_pad             # 2 dst tiles, 1 src tile
    n_pad = _round_up(n, 2048)
    return n_pad, 512, 2048                         # large graphs


def _pad_to(a, shape):
    return jnp.pad(a, [(0, t - s) for s, t in zip(a.shape, shape)])


# ---------------------------------------------------------------------------
# Fused aggregation kernel:  GELU( A @ Y_rel  +  Y_root )
#   A      : (n_pad, n_pad) bf16, tiled (tm, tk) over a (dst, src) grid
#   Y_rel  : (n_pad, f_out) bf16, VMEM-resident (constant index_map)
#   Y_root : (n_pad, f_out) bf16, dst-tiled (already contains the bias)
# ---------------------------------------------------------------------------
def _aggregate_gelu_kernel(a_ref, y_rel_ref, y_root_ref, o_ref, acc_ref):
    k = pl.program_id(1)
    tk = a_ref.shape[1]

    @pl.when(k == 0)
    def _():
        acc_ref[...] = jnp.zeros_like(acc_ref)

    # Single-pass bf16 MXU matmul with f32 accumulation; the src slice of the
    # resident Y_rel buffer is taken in-kernel (no per-tile HBM re-read).
    src0 = pl.multiple_of(k * tk, tk)
    acc_ref[...] += jnp.dot(a_ref[...], y_rel_ref[pl.ds(src0, tk), :],
                            preferred_element_type=jnp.float32)

    # Finalize once per dst tile: add root/bias term, GELU, store lane-dense.
    @pl.when(k == pl.num_programs(1) - 1)
    def _():
        h = acc_ref[...] + y_root_ref[...].astype(jnp.float32)
        o_ref[...] = _gelu_exact(h).astype(o_ref.dtype)


def aggregate_gelu(adj_bf16, y_rel, y_root, *, tm, tk, out_dtype):
    n_pad, f_out = y_rel.shape
    grid = (n_pad // tm, n_pad // tk)

    # Triple-buffer the dominant A stream when the grid is deep enough.
    if grid[0] * grid[1] >= 3:
        a_spec = pl.BlockSpec((tm, tk), lambda i, k: (i, k),
                              pipeline_mode=pl.Buffered(3))
    else:
        a_spec = pl.BlockSpec((tm, tk), lambda i, k: (i, k))

    bytes_out = n_pad * f_out * jnp.dtype(out_dtype).itemsize
    cost = pl.CostEstimate(
        flops=2 * n_pad * n_pad * f_out,
        transcendentals=n_pad * f_out,
        bytes_accessed=(adj_bf16.size * 2 + y_rel.size * 2
                        + y_root.size * 2 + bytes_out),
    )

    return pl.pallas_call(
        _aggregate_gelu_kernel,
        out_shape=jax.ShapeDtypeStruct((n_pad, f_out), out_dtype),
        grid_spec=pltpu.PrefetchScalarGridSpec(
            num_scalar_prefetch=0,
            grid=grid,
            in_specs=[
                a_spec,                                               # A[dst, src]
                pl.BlockSpec((n_pad, f_out), lambda i, k: (0, 0)),    # Y_rel (resident)
                pl.BlockSpec((tm, f_out), lambda i, k: (i, 0)),       # Y_root dst rows
            ],
            out_specs=pl.BlockSpec((tm, f_out), lambda i, k: (i, 0)),
            scratch_shapes=[pltpu.VMEM((tm, f_out), jnp.float32)],
        ),
        compiler_params=pltpu.CompilerParams(
            dimension_semantics=("parallel", "arbitrary"),
            # Tiles are sized so the worst case (A 3x2 MiB, resident Y_rel,
            # acc, out) stays well under 32 MiB — safe on v7x (64 MiB phys)
            # and trivially so on v5e/v6e (128 MiB).
            vmem_limit_bytes=32 * 1024 * 1024,
        ),
        cost_estimate=cost,
    )(adj_bf16, y_rel, y_root)


# ---------------------------------------------------------------------------
# Model
# ---------------------------------------------------------------------------
def init_params(key, num_features, embedding_size):
    """Deterministic synthetic parameters (shapes match the torch module)."""
    layer_dims = {
        "initial_conv": (num_features, embedding_size),
        "conv1": (embedding_size, embedding_size),
        "conv2": (embedding_size, embedding_size),
        "conv3": (embedding_size, embedding_size),
    }
    params = {}
    keys = jax.random.split(key, 3 * len(layer_dims) + 2)
    k_idx = 0
    for name, (f_in, f_out) in layer_dims.items():
        scale = (2.0 / (f_in + f_out)) ** 0.5
        w_rel = scale * jax.random.normal(keys[k_idx], (f_in, f_out), jnp.float32)
        w_root = scale * jax.random.normal(keys[k_idx + 1], (f_in, f_out), jnp.float32)
        b_rel = 0.01 * jax.random.normal(keys[k_idx + 2], (1, f_out), jnp.float32)
        params[name] = {"w_rel": w_rel, "w_root": w_root, "b_rel": b_rel}
        k_idx += 3
    scale = (2.0 / (embedding_size + 1)) ** 0.5
    params["out"] = {
        "w": scale * jax.random.normal(keys[k_idx], (embedding_size, 1), jnp.float32),
        "b": 0.01 * jax.random.normal(keys[k_idx + 1], (1, 1), jnp.float32),
    }
    return params


@functools.partial(jax.jit, static_argnames=("num_graphs",))
def graph_conv_model(params, x, edge_index, batch_index, num_graphs):
    """Forward pass of GraphConvModel (eval mode)."""
    n, f = x.shape
    x = x.astype(jnp.float32)
    n_pad, tm, tk = _choose_tiling(n)

    # Dense adjacency A[dst, src] = multiplicity of edge src->dst ("add" aggr),
    # built directly at its bf16 storage dtype (exact for multiplicities <= 256;
    # halves HBM traffic of the dominant N x N operand vs f32).
    # TODO(synk): for genuinely sparse graphs a CSR scalar-prefetch gather
    # kernel would replace this O(N^2) dense aggregation.
    src, dst = edge_index[0], edge_index[1]
    adj = jnp.zeros((n_pad, n_pad), jnp.bfloat16).at[dst, src].add(
        jnp.ones((), jnp.bfloat16))

    emb = params["out"]["w"].shape[0]
    f_pad = _round_up(f, LANE)
    # Zero-pad features to 128 lanes; activations live in bf16 between layers.
    # Invariant: padded node rows never contribute to real rows (their A
    # columns are zero) and are sliced off before pooling; padded feature
    # lanes stay exactly zero (zero weight rows/cols, zero bias, GELU(0)=0).
    h = _pad_to(x, (n_pad, f_pad)).astype(jnp.bfloat16)

    layers = ("initial_conv", "conv1", "conv2", "conv3")
    for li, layer in enumerate(layers):
        p = params[layer]
        f_in, f_out = p["w_rel"].shape
        fi, fo = _round_up(f_in, LANE), _round_up(f_out, LANE)
        w_rel = _pad_to(p["w_rel"], (fi, fo)).astype(jnp.bfloat16)
        w_root = _pad_to(p["w_root"], (fi, fo)).astype(jnp.bfloat16)
        b_rel = _pad_to(p["b_rel"], (1, fo))
        # (A X) W_rel == A (X W_rel): pre-transform once per layer (tiny
        # N x F x F matmuls, plain JAX), so the Pallas kernel only streams A.
        y_rel = jnp.dot(h, w_rel,
                        preferred_element_type=jnp.float32).astype(jnp.bfloat16)
        y_root = (jnp.dot(h, w_root, preferred_element_type=jnp.float32)
                  + b_rel).astype(jnp.bfloat16)
        out_dtype = jnp.float32 if li == len(layers) - 1 else jnp.bfloat16
        h = aggregate_gelu(adj, y_rel, y_root, tm=tm, tk=tk, out_dtype=out_dtype)
        # TODO(synk): Dropout(p=0.5) is identity at inference; torch train-mode
        # RNG is not reproducible here, so dropout is omitted.

    h = h[:n, :emb].astype(jnp.float32)   # drop padded nodes / zero feature lanes

    # Global mean pool + final Linear in plain JAX: trivial (G x emb) work with
    # a 1-lane-wide output — a dedicated kernel would be pure launch overhead.
    onehot = (batch_index[:, None] == jnp.arange(num_graphs)[None, :]
              ).astype(jnp.float32)                       # (N, G)
    counts = jnp.maximum(onehot.sum(axis=0), 1.0)
    pooled = (onehot.T @ h) / counts[:, None]             # (G, emb)
    return pooled @ params["out"]["w"] + params["out"]["b"]


# ---------------------------------------------------------------------------
# Deterministic example
# ---------------------------------------------------------------------------
def _make_example_graph(key, num_nodes, nodes_per_graph, num_features, num_extra_edges):
    """Two ring graphs + a few random intra-graph edges (deterministic)."""
    kx, ke1, ke2 = jax.random.split(key, 3)
    x = jax.random.normal(kx, (num_nodes, num_features), jnp.float32)

    srcs, dsts = [], []
    num_graphs = num_nodes // nodes_per_graph
    for g in range(num_graphs):
        off = g * nodes_per_graph
        for i in range(nodes_per_graph):
            a = off + i
            b = off + (i + 1) % nodes_per_graph
            srcs += [a, b]
            dsts += [b, a]
    extra_src = jax.random.randint(ke1, (num_extra_edges,), 0, num_nodes)
    hop = jax.random.randint(ke2, (num_extra_edges,), 1, nodes_per_graph)
    extra_dst = (extra_src % nodes_per_graph + hop) % nodes_per_graph \
                + (extra_src // nodes_per_graph) * nodes_per_graph

    src = jnp.concatenate([jnp.array(srcs, jnp.int32), extra_src.astype(jnp.int32)])
    dst = jnp.concatenate([jnp.array(dsts, jnp.int32), extra_dst.astype(jnp.int32)])
    edge_index = jnp.stack([src, dst], axis=0)

    batch_index = jnp.repeat(jnp.arange(num_graphs, dtype=jnp.int32), nodes_per_graph)
    return x, edge_index, batch_index, num_graphs


if __name__ == "__main__":
    NUM_FEATURES = 4
    EMBEDDING_SIZE = 32
    NUM_NODES = 16
    NODES_PER_GRAPH = 8
    NUM_EXTRA_EDGES = 8

    key = jax.random.PRNGKey(0)
    k_data, k_params = jax.random.split(key)

    x, edge_index, batch_index, num_graphs = _make_example_graph(
        k_data, NUM_NODES, NODES_PER_GRAPH, NUM_FEATURES, NUM_EXTRA_EDGES)
    params = init_params(k_params, NUM_FEATURES, EMBEDDING_SIZE)

    out = graph_conv_model(params, x, edge_index, batch_index, num_graphs)
    out = jax.block_until_ready(out)
    assert out.shape == (num_graphs, 1) and out.dtype == jnp.float32
    print("KERNEL_OK")
</pallas_src>

<mosaic_0001>
module attributes {stable_mosaic.version = 11 : i64} {
  func.func @_aggregate_gelu_kernel(%arg0: i32, %arg1: i32, %arg2: memref<128x128xbf16, #tpu.memory_space<vmem>>, %arg3: memref<128x128xbf16, #tpu.memory_space<vmem>>, %arg4: memref<128x128xbf16, #tpu.memory_space<vmem>>, %arg5: memref<128x128xbf16, #tpu.memory_space<vmem>>, %arg6: memref<128x128xf32, #tpu.memory_space<vmem>>) attributes {dimension_semantics = [#tpu.dimension_semantics<parallel>, #tpu.dimension_semantics<arbitrary>], iteration_bounds = array<i64: 1, 1>, scalar_prefetch = 0 : i64, scratch_operands = 1 : i64, tpu.core_type = #tpu.core_type<tc>, window_params = [{transform_indices = @transform_0, window_bounds = array<i64: 128, 128>}, {pipeline_mode = #tpu.pipeline_mode<synchronous>, transform_indices = @transform_1, window_bounds = array<i64: 128, 128>}, {transform_indices = @transform_2, window_bounds = array<i64: 128, 128>}, {transform_indices = @transform_3, window_bounds = array<i64: 128, 128>}]} {
    %c0_i32 = arith.constant 0 : i32
    %0 = arith.cmpi eq, %arg1, %c0_i32 : i32
    %1 = arith.extui %0 : i1 to i32
    %c0_i32_0 = arith.constant 0 : i32
    %2 = arith.cmpi ne, %1, %c0_i32_0 : i32
    scf.if %2 {
      %cst_9 = arith.constant 0.000000e+00 : f32
      %15 = vector.broadcast %cst_9 : f32 to vector<128x128xf32>
      %c0_10 = arith.constant 0 : index
      %c0_11 = arith.constant 0 : index
      %16 = vector.load %arg6[%c0_10, %c0_11] : memref<128x128xf32, #tpu.memory_space<vmem>>, vector<128x128xf32>
      tpu.vector_store %arg6[%c0_10, %c0_11], %15 {strides = array<i32>} : memref<128x128xf32, #tpu.memory_space<vmem>>, vector<128x128xf32>,
    } else {
    }
    %c128_i32 = arith.constant 128 : i32
    %3 = arith.muli %arg1, %c128_i32 : i32
    %4 = tpu.assume_multiple %3, 128 : i32
    %c0 = arith.constant 0 : index
    %c0_1 = arith.constant 0 : index
    %5 = vector.load %arg6[%c0, %c0_1] : memref<128x128xf32, #tpu.memory_space<vmem>>, vector<128x128xf32>
    %c0_2 = arith.constant 0 : index
    %c0_3 = arith.constant 0 : index
    %6 = vector.load %arg2[%c0_2, %c0_3] : memref<128x128xbf16, #tpu.memory_space<vmem>>, vector<128x128xbf16>
    %7 = arith.index_cast %4 : i32 to index
    %c0_4 = arith.constant 0 : index
    %8 = vector.load %arg3[%7, %c0_4] : memref<128x128xbf16, #tpu.memory_space<vmem>>, vector<128x128xbf16>
    %cst = arith.constant dense<0.000000e+00> : vector<128x128xf32>
    %9 = tpu.matmul %6, %8, %cst {dimension_numbers = #tpu.dot_dimension_numbers<[1], [0], [0], [1], [0, 0, 1, 1], [], []>} : vector<128x128xbf16>, vector<128x128xbf16>, vector<128x128xf32> -> vector<128x128xf32>
    %10 = arith.addf %5, %9 : vector<128x128xf32>
    %c0_5 = arith.constant 0 : index
    %c0_6 = arith.constant 0 : index
    %11 = vector.load %arg6[%c0_5, %c0_6] : memref<128x128xf32, #tpu.memory_space<vmem>>, vector<128x128xf32>
    tpu.vector_store %arg6[%c0_5, %c0_6], %10 {strides = array<i32>} : memref<128x128xf32, #tpu.memory_space<vmem>>, vector<128x128xf32>,
    %c0_i32_7 = arith.constant 0 : i32
    %12 = arith.cmpi eq, %arg1, %c0_i32_7 : i32
    %13 = arith.extui %12 : i1 to i32
    %c0_i32_8 = arith.constant 0 : i32
    %14 = arith.cmpi ne, %13, %c0_i32_8 : i32
    scf.if %14 {
      %c0_9 = arith.constant 0 : index
      %c0_10 = arith.constant 0 : index
      %15 = vector.load %arg6[%c0_9, %c0_10] : memref<128x128xf32, #tpu.memory_space<vmem>>, vector<128x128xf32>
      %c0_11 = arith.constant 0 : index
      %c0_12 = arith.constant 0 : index
      %16 = vector.load %arg4[%c0_11, %c0_12] : memref<128x128xbf16, #tpu.memory_space<vmem>>, vector<128x128xbf16>
      %17 = arith.extf %16 : vector<128x128xbf16> to vector<128x128xf32>
      %18 = arith.addf %15, %17 : vector<128x128xf32>
      %cst_13 = arith.constant 5.000000e-01 : f32
      %19 = vector.broadcast %cst_13 : f32 to vector<128x128xf32>
      %20 = arith.mulf %19, %18 : vector<128x128xf32>
      %cst_14 = arith.constant 0.707106769 : f32
      %21 = vector.broadcast %cst_14 : f32 to vector<128x128xf32>
      %22 = arith.mulf %18, %21 : vector<128x128xf32>
      %23 = math.erf %22 : vector<128x128xf32>
      %cst_15 = arith.constant 1.000000e+00 : f32
      %24 = vector.broadcast %cst_15 : f32 to vector<128x128xf32>
      %25 = arith.addf %24, %23 : vector<128x128xf32>
      %26 = arith.mulf %20, %25 : vector<128x128xf32>
      %27 = arith.truncf %26 : vector<128x128xf32> to vector<128x128xbf16>
      %c0_16 = arith.constant 0 : index
      %c0_17 = arith.constant 0 : index
      %28 = vector.load %arg5[%c0_16, %c0_17] : memref<128x128xbf16, #tpu.memory_space<vmem>>, vector<128x128xbf16>
      tpu.vector_store %arg5[%c0_16, %c0_17], %27 {strides = array<i32>} : memref<128x128xbf16, #tpu.memory_space<vmem>>, vector<128x128xbf16>,
    } else {
    }
    return
  }
  func.func @transform_0(%arg0: i32, %arg1: i32) -> (i32, i32) {
    %c0_i32 = arith.constant 0 : i32
    return %arg0, %arg1 : i32, i32
  }
  func.func @transform_1(%arg0: i32, %arg1: i32) -> (i32, i32) {
    %c0_i32 = arith.constant 0 : i32
    %c0_i32_0 = arith.constant 0 : i32
    %c0_i32_1 = arith.constant 0 : i32
    return %c0_i32, %c0_i32_0 : i32, i32
  }
  func.func @transform_2(%arg0: i32, %arg1: i32) -> (i32, i32) {
    %c0_i32 = arith.constant 0 : i32
    %c0_i32_0 = arith.constant 0 : i32
    return %arg0, %c0_i32 : i32, i32
  }
  func.func @transform_3(%arg0: i32, %arg1: i32) -> (i32, i32) {
    %c0_i32 = arith.constant 0 : i32
    %c0_i32_0 = arith.constant 0 : i32
    return %arg0, %c0_i32 : i32, i32
  }
}

module attributes {stable_mosaic.version = 11 : i64} {
  func.func @_aggregate_gelu_kernel(%arg0: i32, %arg1: i32, %arg2: memref<128x128xbf16, #tpu.memory_space<vmem>>, %arg3: memref<128x128xbf16, #tpu.memory_space<vmem>>, %arg4: memref<128x128xbf16, #tpu.memory_space<vmem>>, %arg5: memref<128x128xf32, #tpu.memory_space<vmem>>, %arg6: memref<128x128xf32, #tpu.memory_space<vmem>>) attributes {dimension_semantics = [#tpu.dimension_semantics<parallel>, #tpu.dimension_semantics<arbitrary>], iteration_bounds = array<i64: 1, 1>, scalar_prefetch = 0 : i64, scratch_operands = 1 : i64, tpu.core_type = #tpu.core_type<tc>, window_params = [{transform_indices = @transform_0, window_bounds = array<i64: 128, 128>}, {pipeline_mode = #tpu.pipeline_mode<synchronous>, transform_indices = @transform_1, window_bounds = array<i64: 128, 128>}, {transform_indices = @transform_2, window_bounds = array<i64: 128, 128>}, {transform_indices = @transform_3, window_bounds = array<i64: 128, 128>}]} {
    %c0_i32 = arith.constant 0 : i32
    %0 = arith.cmpi eq, %arg1, %c0_i32 : i32
    %1 = arith.extui %0 : i1 to i32
    %c0_i32_0 = arith.constant 0 : i32
    %2 = arith.cmpi ne, %1, %c0_i32_0 : i32
    scf.if %2 {
      %cst_9 = arith.constant 0.000000e+00 : f32
      %15 = vector.broadcast %cst_9 : f32 to vector<128x128xf32>
      %c0_10 = arith.constant 0 : index
      %c0_11 = arith.constant 0 : index
      %16 = vector.load %arg6[%c0_10, %c0_11] : memref<128x128xf32, #tpu.memory_space<vmem>>, vector<128x128xf32>
      tpu.vector_store %arg6[%c0_10, %c0_11], %15 {strides = array<i32>} : memref<128x128xf32, #tpu.memory_space<vmem>>, vector<128x128xf32>,
    } else {
    }
    %c128_i32 = arith.constant 128 : i32
    %3 = arith.muli %arg1, %c128_i32 : i32
    %4 = tpu.assume_multiple %3, 128 : i32
    %c0 = arith.constant 0 : index
    %c0_1 = arith.constant 0 : index
    %5 = vector.load %arg6[%c0, %c0_1] : memref<128x128xf32, #tpu.memory_space<vmem>>, vector<128x128xf32>
    %c0_2 = arith.constant 0 : index
    %c0_3 = arith.constant 0 : index
    %6 = vector.load %arg2[%c0_2, %c0_3] : memref<128x128xbf16, #tpu.memory_space<vmem>>, vector<128x128xbf16>
    %7 = arith.index_cast %4 : i32 to index
    %c0_4 = arith.constant 0 : index
    %8 = vector.load %arg3[%7, %c0_4] : memref<128x128xbf16, #tpu.memory_space<vmem>>, vector<128x128xbf16>
    %cst = arith.constant dense<0.000000e+00> : vector<128x128xf32>
    %9 = tpu.matmul %6, %8, %cst {dimension_numbers = #tpu.dot_dimension_numbers<[1], [0], [0], [1], [0, 0, 1, 1], [], []>} : vector<128x128xbf16>, vector<128x128xbf16>, vector<128x128xf32> -> vector<128x128xf32>
    %10 = arith.addf %5, %9 : vector<128x128xf32>
    %c0_5 = arith.constant 0 : index
    %c0_6 = arith.constant 0 : index
    %11 = vector.load %arg6[%c0_5, %c0_6] : memref<128x128xf32, #tpu.memory_space<vmem>>, vector<128x128xf32>
    tpu.vector_store %arg6[%c0_5, %c0_6], %10 {strides = array<i32>} : memref<128x128xf32, #tpu.memory_space<vmem>>, vector<128x128xf32>,
    %c0_i32_7 = arith.constant 0 : i32
    %12 = arith.cmpi eq, %arg1, %c0_i32_7 : i32
    %13 = arith.extui %12 : i1 to i32
    %c0_i32_8 = arith.constant 0 : i32
    %14 = arith.cmpi ne, %13, %c0_i32_8 : i32
    scf.if %14 {
      %c0_9 = arith.constant 0 : index
      %c0_10 = arith.constant 0 : index
      %15 = vector.load %arg6[%c0_9, %c0_10] : memref<128x128xf32, #tpu.memory_space<vmem>>, vector<128x128xf32>
      %c0_11 = arith.constant 0 : index
      %c0_12 = arith.constant 0 : index
      %16 = vector.load %arg4[%c0_11, %c0_12] : memref<128x128xbf16, #tpu.memory_space<vmem>>, vector<128x128xbf16>
      %17 = arith.extf %16 : vector<128x128xbf16> to vector<128x128xf32>
      %18 = arith.addf %15, %17 : vector<128x128xf32>
      %cst_13 = arith.constant 5.000000e-01 : f32
      %19 = vector.broadcast %cst_13 : f32 to vector<128x128xf32>
      %20 = arith.mulf %19, %18 : vector<128x128xf32>
      %cst_14 = arith.constant 0.707106769 : f32
      %21 = vector.broadcast %cst_14 : f32 to vector<128x128xf32>
      %22 = arith.mulf %18, %21 : vector<128x128xf32>
      %23 = math.erf %22 : vector<128x128xf32>
      %cst_15 = arith.constant 1.000000e+00 : f32
      %24 = vector.broadcast %cst_15 : f32 to vector<128x128xf32>
      %25 = arith.addf %24, %23 : vector<128x128xf32>
      %26 = arith.mulf %20, %25 : vector<128x128xf32>
      %c0_16 = arith.constant 0 : index
      %c0_17 = arith.constant 0 : index
      %27 = vector.load %arg5[%c0_16, %c0_17] : memref<128x128xf32, #tpu.memory_space<vmem>>, vector<128x128xf32>
      tpu.vector_store %arg5[%c0_16, %c0_17], %26 {strides = array<i32>} : memref<128x128xf32, #tpu.memory_space<vmem>>, vector<128x128xf32>,
    } else {
    }
    return
  }
  func.func @transform_0(%arg0: i32, %arg1: i32) -> (i32, i32) {
    %c0_i32 = arith.constant 0 : i32
    return %arg0, %arg1 : i32, i32
  }
  func.func @transform_1(%arg0: i32, %arg1: i32) -> (i32, i32) {
    %c0_i32 = arith.constant 0 : i32
    %c0_i32_0 = arith.constant 0 : i32
    %c0_i32_1 = arith.constant 0 : i32
    return %c0_i32, %c0_i32_0 : i32, i32
  }
  func.func @transform_2(%arg0: i32, %arg1: i32) -> (i32, i32) {
    %c0_i32 = arith.constant 0 : i32
    %c0_i32_0 = arith.constant 0 : i32
    return %arg0, %c0_i32 : i32, i32
  }
  func.func @transform_3(%arg0: i32, %arg1: i32) -> (i32, i32) {
    %c0_i32 = arith.constant 0 : i32
    %c0_i32_0 = arith.constant 0 : i32
    return %arg0, %c0_i32 : i32, i32
  }
}

</mosaic_0001>

<llo_original>
// kernel: graph_conv_model.7
$region0: #{graph_conv_model.7}
  #allocation0 [shape = 'u32[]', space=smem, size = 0x4, offset = 0x4, fixed_abs, tag = 'smem constant byte address 0x4 - core index']
  #allocation1 [shape = 'u32[144,128]{1,0:T(1,128)}', space=vmem, size = 0x12000, scoped, tag = 'internal scratch']
  #allocation2 [shape = 'f32[128,128]{1,0:T(8,128)}', space=vmem, size = 0x10000, scoped, tag = 'scratch operand']
  %s0 = inlined_call_operand.vmem [shape: bf16[128,128], index: 0, kind: input, shape index: {}]
  %s1 = inlined_call_operand.vmem [shape: bf16[128,128], index: 1, kind: input, shape index: {}]
  %s2 = inlined_call_operand.vmem [shape: bf16[128,128], index: 2, kind: input, shape index: {}]
  %s3 = inlined_call_operand.vmem [shape: f32[128,128], index: 3, kind: output, shape index: {}]
  %s4 = sld [smem:[#allocation0]]
  $region30: #{graph_conv_model.7} parent=0
    _
  %s6 = ssub.s32 1, %s4
  %s7 = scalar_select 0, %s6, %s4
  // Predicated region
  $region2: #{graph_conv_model.7} parent=0 // pred_check
    _
  $region3: #{graph_conv_model.7} parent=0 // pred_check_branch
    %9 = sbr.rel (0) target = $region5
  $region4: #{graph_conv_model.7} parent=0 // pred_region
    _
  $region5: #{graph_conv_model.7} parent=0 // pred_fallthru
    _
  // Predicated region
  $region6: #{graph_conv_model.7} parent=0 // pred_check
    _
  $region7: #{graph_conv_model.7} parent=0 // pred_check_branch
    %11 = sbr.rel (0) target = $region9
  $region8: #{graph_conv_model.7} parent=0 // pred_region
    _
  $region9: #{graph_conv_model.7} parent=0 // pred_fallthru
    _
  // Predicated region
  $region10: #{graph_conv_model.7} parent=0 // pred_check
    _
  $region11: #{graph_conv_model.7} parent=0 // pred_check_branch
    %13 = sbr.rel (0) target = $region13
  $region12: #{graph_conv_model.7} parent=0 // pred_region
    _
  $region13: #{graph_conv_model.7} parent=0 // pred_fallthru
    _
  %p15 = scmp.eq.s32.totalorder 0, 0
  // Predicated region
  $region14: #{graph_conv_model.7} parent=0 // pred_check
    %p16 = pneg %p15
  $region15: #{graph_conv_model.7} parent=0 // pred_check_branch
    %18 = sbr.rel (%p16) target = $region17
  $region16: #{graph_conv_model.7} parent=0 // pred_region
    %19 = vst [vmem:[#allocation2] sm:$0xff] 0.0
    %20 = vst [vmem:[#allocation2 + $0x8] sm:$0xff] 0.0
    %21 = vst [vmem:[#allocation2 + $0x10] sm:$0xff] 0.0
    %22 = vst [vmem:[#allocation2 + $0x18] sm:$0xff] 0.0
    %23 = vst [vmem:[#allocation2 + $0x20] sm:$0xff] 0.0
    %24 = vst [vmem:[#allocation2 + $0x28] sm:$0xff] 0.0
    %25 = vst [vmem:[#allocation2 + $0x30] sm:$0xff] 0.0
    %26 = vst [vmem:[#allocation2 + $0x38] sm:$0xff] 0.0
    %27 = vst [vmem:[#allocation2 + $0x40] sm:$0xff] 0.0
    %28 = vst [vmem:[#allocation2 + $0x48] sm:$0xff] 0.0
    %29 = vst [vmem:[#allocation2 + $0x50] sm:$0xff] 0.0
    %30 = vst [vmem:[#allocation2 + $0x58] sm:$0xff] 0.0
    %31 = vst [vmem:[#allocation2 + $0x60] sm:$0xff] 0.0
    %32 = vst [vmem:[#allocation2 + $0x68] sm:$0xff] 0.0
    %33 = vst [vmem:[#allocation2 + $0x70] sm:$0xff] 0.0
    %34 = vst [vmem:[#allocation2 + $0x78] sm:$0xff] 0.0
  $region17: #{graph_conv_model.7} parent=0 // pred_fallthru
    _
  %s35 = smul.u32 0, 128
  %v36 = vld [vmem:[#allocation2] sm:$0xff]
  %v37 = vld [vmem:[#allocation2 + $0x8] sm:$0xff]
  %v38 = vld [vmem:[#allocation2 + $0x10] sm:$0xff]
  %v39 = vld [vmem:[#allocation2 + $0x18] sm:$0xff]
  %v40 = vld [vmem:[#allocation2 + $0x20] sm:$0xff]
  %v41 = vld [vmem:[#allocation2 + $0x28] sm:$0xff]
  %v42 = vld [vmem:[#allocation2 + $0x30] sm:$0xff]
  %v43 = vld [vmem:[#allocation2 + $0x38] sm:$0xff]
  %v44 = vld [vmem:[#allocation2 + $0x40] sm:$0xff]
  %v45 = vld [vmem:[#allocation2 + $0x48] sm:$0xff]
  %v46 = vld [vmem:[#allocation2 + $0x50] sm:$0xff]
  %v47 = vld [vmem:[#allocation2 + $0x58] sm:$0xff]
  %v48 = vld [vmem:[#allocation2 + $0x60] sm:$0xff]
  %v49 = vld [vmem:[#allocation2 + $0x68] sm:$0xff]
  %v50 = vld [vmem:[#allocation2 + $0x70] sm:$0xff]
  %v51 = vld [vmem:[#allocation2 + $0x78] sm:$0xff]
  %v52 = vld [vmem:[%s0] sm:$0xf]
  %v53 = vld [vmem:[%s0 + $0x4] sm:$0xf]
  %v54 = vld [vmem:[%s0 + $0x8] sm:$0xf]
  %v55 = vld [vmem:[%s0 + $0xc] sm:$0xf]
  %v56 = vld [vmem:[%s0 + $0x10] sm:$0xf]
  %v57 = vld [vmem:[%s0 + $0x14] sm:$0xf]
  %v58 = vld [vmem:[%s0 + $0x18] sm:$0xf]
  %v59 = vld [vmem:[%s0 + $0x1c] sm:$0xf]
  %v60 = vld [vmem:[%s0 + $0x20] sm:$0xf]
  %v61 = vld [vmem:[%s0 + $0x24] sm:$0xf]
  %v62 = vld [vmem:[%s0 + $0x28] sm:$0xf]
  %v63 = vld [vmem:[%s0 + $0x2c] sm:$0xf]
  %v64 = vld [vmem:[%s0 + $0x30] sm:$0xf]
  %v65 = vld [vmem:[%s0 + $0x34] sm:$0xf]
  %v66 = vld [vmem:[%s0 + $0x38] sm:$0xf]
  %v67 = vld [vmem:[%s0 + $0x3c] sm:$0xf]
  %s68 = sshra.s32 %s35, 3
  %s69 = sand.u32 %s35, 7
  %s70 = smul.addr %s68, 4
  %s71 = scalar_lea.vmem %s1, %s70
  %v72 = vld [vmem:[%s71] sm:$0xf]
  %v73 = vld [vmem:[%s71 + $0x4] sm:$0xf]
  %v74 = vld [vmem:[%s71 + $0x8] sm:$0xf]
  %v75 = vld [vmem:[%s71 + $0xc] sm:$0xf]
  %v76 = vld [vmem:[%s71 + $0x10] sm:$0xf]
  %v77 = vld [vmem:[%s71 + $0x14] sm:$0xf]
  %v78 = vld [vmem:[%s71 + $0x18] sm:$0xf]
  %v79 = vld [vmem:[%s71 + $0x1c] sm:$0xf]
  %v80 = vld [vmem:[%s71 + $0x20] sm:$0xf]
  %v81 = vld [vmem:[%s71 + $0x24] sm:$0xf]
  %v82 = vld [vmem:[%s71 + $0x28] sm:$0xf]
  %v83 = vld [vmem:[%s71 + $0x2c] sm:$0xf]
  %v84 = vld [vmem:[%s71 + $0x30] sm:$0xf]
  %v85 = vld [vmem:[%s71 + $0x34] sm:$0xf]
  %v86 = vld [vmem:[%s71 + $0x38] sm:$0xf]
  %v87 = vld [vmem:[%s71 + $0x3c] sm:$0xf]
  %v104 = vunpack.c.l.b16 %v52
  %v105 = vunpack.c.l.b16 %v53
  %v106 = vunpack.c.l.b16 %v54
  %v107 = vunpack.c.l.b16 %v55
  %v108 = vunpack.c.l.b16 %v56
  %v109 = vunpack.c.l.b16 %v57
  %v110 = vunpack.c.l.b16 %v58
  %v111 = vunpack.c.l.b16 %v59
  %v112 = vunpack.c.l.b16 %v60
  %v113 = vunpack.c.l.b16 %v61
  %v114 = vunpack.c.l.b16 %v62
  %v115 = vunpack.c.l.b16 %v63
  %v116 = vunpack.c.l.b16 %v64
  %v117 = vunpack.c.l.b16 %v65
  %v118 = vunpack.c.l.b16 %v66
  %v119 = vunpack.c.l.b16 %v67
  %v120 = vpack.c.b16 %v105, %v104
  %v121 = vpack.c.b16 %v107, %v106
  %v122 = vpack.c.b16 %v109, %v108
  %v123 = vpack.c.b16 %v111, %v110
  %v124 = vpack.c.b16 %v113, %v112
  %v125 = vpack.c.b16 %v115, %v114
  %v126 = vpack.c.b16 %v117, %v116
  %v127 = vpack.c.b16 %v119, %v118
  %v152 = vunpack.c.l.b16 %v72
  %v153 = vunpack.c.l.b16 %v73
  %v154 = vunpack.c.l.b16 %v74
  %v155 = vunpack.c.l.b16 %v75
  %v156 = vunpack.c.l.b16 %v76
  %v157 = vunpack.c.l.b16 %v77
  %v158 = vunpack.c.l.b16 %v78
  %v159 = vunpack.c.l.b16 %v79
  %v160 = vunpack.c.l.b16 %v80
  %v161 = vunpack.c.l.b16 %v81
  %v162 = vunpack.c.l.b16 %v82
  %v163 = vunpack.c.l.b16 %v83
  %v164 = vunpack.c.l.b16 %v84
  %v165 = vunpack.c.l.b16 %v85
  %v166 = vunpack.c.l.b16 %v86
  %v167 = vunpack.c.l.b16 %v87
  %v168 = vpack.c.b16 %v153, %v152
  %v169 = vpack.c.b16 %v155, %v154
  %v170 = vpack.c.b16 %v157, %v156
  %v171 = vpack.c.b16 %v159, %v158
  %v172 = vpack.c.b16 %v161, %v160
  %v173 = vpack.c.b16 %v163, %v162
  %v174 = vpack.c.b16 %v165, %v164
  %v175 = vpack.c.b16 %v167, %v166
  %184 = vmatprep.subr.bf16.mxu0 0
  %185 = vmatpush1.bf16.msra.mxu0 %v168
  %186 = vmatprep.subr.bf16.mxu0 0
  %187 = vmatpush1.bf16.msra.mxu0 %v169
  %188 = vmatprep.subr.bf16.mxu0 0
  %189 = vmatpush1.bf16.msra.mxu0 %v170
  %190 = vmatprep.subr.bf16.mxu0 0
  %191 = vmatpush1.bf16.msra.mxu0 %v171
  %192 = vmatprep.subr.bf16.mxu0 0
  %193 = vmatpush1.bf16.msra.mxu0 %v172
  %194 = vmatprep.subr.bf16.mxu0 0
  %195 = vmatpush1.bf16.msra.mxu0 %v173
  %196 = vmatprep.subr.bf16.mxu0 0
  %197 = vmatpush1.bf16.msra.mxu0 %v174
  %198 = vmatprep.subr.bf16.mxu0 0
  %199 = vmatpush1.bf16.msra.mxu0 %v175
  %200 = vmatprep.subr.bf16.mxu0 0
  %201 = vmatpush1.bf16.msra.mxu0 0
  %202 = vmatprep.subr.bf16.mxu0 0
  %203 = vmatpush1.bf16.msra.mxu0 0
  %204 = vmatprep.subr.bf16.mxu0 0
  %205 = vmatpush1.bf16.msra.mxu0 0
  %206 = vmatprep.subr.bf16.mxu0 0
  %207 = vmatpush1.bf16.msra.mxu0 0
  %208 = vmatprep.subr.bf16.mxu0 0
  %209 = vmatpush1.bf16.msra.mxu0 0
  %210 = vmatprep.subr.bf16.mxu0 0
  %211 = vmatpush1.bf16.msra.mxu0 0
  %212 = vmatprep.subr.bf16.mxu0 0
  %213 = vmatpush1.bf16.msra.mxu0 0
  %214 = vmatprep.subr.bf16.mxu0 0
  %215 = vmatpush1.bf16.msra.mxu0 0
  %216 = vmatprep.mubr.bf16.mxu0 0
  %217 = vmatmul.mubr.bf16.gmra.mrb[0].mxu0 %v120
  %v218 = vpop.f32.mrb[0].mxu0
  %v219 = vadd.f32 0.0, %v218
  %v220 = vpop.f32.mrb[0].mxu0
  %v221 = vpop.f32.mrb[0].mxu0
  %v222 = vadd.f32 0.0, %v221
  %v223 = vpop.f32.mrb[0].mxu0
  %224 = vmatprep.mubr.bf16.mxu0 0
  %225 = vmatmul.mubr.bf16.gmra.mrb[0].mxu0 %v121
  %v226 = vpop.f32.mrb[0].mxu0
  %v227 = vadd.f32 0.0, %v226
  %v228 = vpop.f32.mrb[0].mxu0
  %v229 = vpop.f32.mrb[0].mxu0
  %v230 = vadd.f32 0.0, %v229
  %v231 = vpop.f32.mrb[0].mxu0
  %232 = vmatprep.mubr.bf16.mxu0 0
  %233 = vmatmul.mubr.bf16.gmra.mrb[0].mxu0 %v122
  %v234 = vpop.f32.mrb[0].mxu0
  %v235 = vadd.f32 0.0, %v234
  %v236 = vpop.f32.mrb[0].mxu0
  %v237 = vpop.f32.mrb[0].mxu0
  %v238 = vadd.f32 0.0, %v237
  %v239 = vpop.f32.mrb[0].mxu0
  %240 = vmatprep.mubr.bf16.mxu0 0
  %241 = vmatmul.mubr.bf16.gmra.mrb[0].mxu0 %v123
  %v242 = vpop.f32.mrb[0].mxu0
  %v243 = vadd.f32 0.0, %v242
  %v244 = vpop.f32.mrb[0].mxu0
  %v245 = vpop.f32.mrb[0].mxu0
  %v246 = vadd.f32 0.0, %v245
  %v247 = vpop.f32.mrb[0].mxu0
  %248 = vmatprep.mubr.bf16.mxu0 0
  %249 = vmatmul.mubr.bf16.gmra.mrb[0].mxu0 %v124
  %v250 = vpop.f32.mrb[0].mxu0
  %v251 = vadd.f32 0.0, %v250
  %v252 = vpop.f32.mrb[0].mxu0
  %v253 = vpop.f32.mrb[0].mxu0
  %v254 = vadd.f32 0.0, %v253
  %v255 = vpop.f32.mrb[0].mxu0
  %256 = vmatprep.mubr.bf16.mxu0 0
  %257 = vmatmul.mubr.bf16.gmra.mrb[0].mxu0 %v125
  %v258 = vpop.f32.mrb[0].mxu0
  %v259 = vadd.f32 0.0, %v258
  %v260 = vpop.f32.mrb[0].mxu0
  %v261 = vpop.f32.mrb[0].mxu0
  %v262 = vadd.f32 0.0, %v261
  %v263 = vpop.f32.mrb[0].mxu0
  %264 = vmatprep.mubr.bf16.mxu0 0
  %265 = vmatmul.mubr.bf16.gmra.mrb[0].mxu0 %v126
  %v266 = vpop.f32.mrb[0].mxu0
  %v267 = vadd.f32 0.0, %v266
  %v268 = vpop.f32.mrb[0].mxu0
  %v269 = vpop.f32.mrb[0].mxu0
  %v270 = vadd.f32 0.0, %v269
  %v271 = vpop.f32.mrb[0].mxu0
  %272 = vmatprep.mubr.bf16.mxu0 0
  %273 = vmatmul.mubr.bf16.gmra.mrb[0].mxu0 %v127
  %v274 = vpop.f32.mrb[0].mxu0
  %v275 = vadd.f32 0.0, %v274
  %v276 = vpop.f32.mrb[0].mxu0
  %v277 = vpop.f32.mrb[0].mxu0
  %v278 = vadd.f32 0.0, %v277
  %v279 = vpop.f32.mrb[0].mxu0
  %280 = vdwg.mxu0
  %v281 = vadd.f32 %v36, %v219
  %v282 = vadd.f32 %v37, %v222
  %v283 = vadd.f32 %v38, %v227
  %v284 = vadd.f32 %v39, %v230
  %v285 = vadd.f32 %v40, %v235
  %v286 = vadd.f32 %v41, %v238
  %v287 = vadd.f32 %v42, %v243
  %v288 = vadd.f32 %v43, %v246
  %v289 = vadd.f32 %v44, %v251
  %v290 = vadd.f32 %v45, %v254
  %v291 = vadd.f32 %v46, %v259
  %v292 = vadd.f32 %v47, %v262
  %v293 = vadd.f32 %v48, %v267
  %v294 = vadd.f32 %v49, %v270
  %v295 = vadd.f32 %v50, %v275
  %v296 = vadd.f32 %v51, %v278
  %297 = vst [vmem:[#allocation2] sm:$0xff] %v281
  %298 = vst [vmem:[#allocation2 + $0x8] sm:$0xff] %v282
  %299 = vst [vmem:[#allocation2 + $0x10] sm:$0xff] %v283
  %300 = vst [vmem:[#allocation2 + $0x18] sm:$0xff] %v284
  %301 = vst [vmem:[#allocation2 + $0x20] sm:$0xff] %v285
  %302 = vst [vmem:[#allocation2 + $0x28] sm:$0xff] %v286
  %303 = vst [vmem:[#allocation2 + $0x30] sm:$0xff] %v287
  %304 = vst [vmem:[#allocation2 + $0x38] sm:$0xff] %v288
  %305 = vst [vmem:[#allocation2 + $0x40] sm:$0xff] %v289
  %306 = vst [vmem:[#allocation2 + $0x48] sm:$0xff] %v290
  %307 = vst [vmem:[#allocation2 + $0x50] sm:$0xff] %v291
  %308 = vst [vmem:[#allocation2 + $0x58] sm:$0xff] %v292
  %309 = vst [vmem:[#allocation2 + $0x60] sm:$0xff] %v293
  %310 = vst [vmem:[#allocation2 + $0x68] sm:$0xff] %v294
  %311 = vst [vmem:[#allocation2 + $0x70] sm:$0xff] %v295
  %312 = vst [vmem:[#allocation2 + $0x78] sm:$0xff] %v296
  // Predicated region
  $region18: #{graph_conv_model.7} parent=0 // pred_check
    %p313 = pneg %p15
  $region19: #{graph_conv_model.7} parent=0 // pred_check_branch
    %315 = sbr.rel (%p313) target = $region21
  $region20: #{graph_conv_model.7} parent=0 // pred_region
    %v316 = vld [vmem:[#allocation2] sm:$0xff]
    %v317 = vld [vmem:[#allocation2 + $0x8] sm:$0xff]
    %v318 = vld [vmem:[#allocation2 + $0x10] sm:$0xff]
    %v319 = vld [vmem:[#allocation2 + $0x18] sm:$0xff]
    %v320 = vld [vmem:[#allocation2 + $0x20] sm:$0xff]
    %v321 = vld [vmem:[#allocation2 + $0x28] sm:$0xff]
    %v322 = vld [vmem:[#allocation2 + $0x30] sm:$0xff]
    %v323 = vld [vmem:[#allocation2 + $0x38] sm:$0xff]
    %v324 = vld [vmem:[#allocation2 + $0x40] sm:$0xff]
    %v325 = vld [vmem:[#allocation2 + $0x48] sm:$0xff]
    %v326 = vld [vmem:[#allocation2 + $0x50] sm:$0xff]
    %v327 = vld [vmem:[#allocation2 + $0x58] sm:$0xff]
    %v328 = vld [vmem:[#allocation2 + $0x60] sm:$0xff]
    %v329 = vld [vmem:[#allocation2 + $0x68] sm:$0xff]
    %v330 = vld [vmem:[#allocation2 + $0x70] sm:$0xff]
    %v331 = vld [vmem:[#allocation2 + $0x78] sm:$0xff]
    %v332 = vld [vmem:[%s2] sm:$0xf]
    %v333 = vld [vmem:[%s2 + $0x4] sm:$0xf]
    %v334 = vld [vmem:[%s2 + $0x8] sm:$0xf]
    %v335 = vld [vmem:[%s2 + $0xc] sm:$0xf]
    %v336 = vld [vmem:[%s2 + $0x10] sm:$0xf]
    %v337 = vld [vmem:[%s2 + $0x14] sm:$0xf]
    %v338 = vld [vmem:[%s2 + $0x18] sm:$0xf]
    %v339 = vld [vmem:[%s2 + $0x1c] sm:$0xf]
    %v340 = vld [vmem:[%s2 + $0x20] sm:$0xf]
    %v341 = vld [vmem:[%s2 + $0x24] sm:$0xf]
    %v342 = vld [vmem:[%s2 + $0x28] sm:$0xf]
    %v343 = vld [vmem:[%s2 + $0x2c] sm:$0xf]
    %v344 = vld [vmem:[%s2 + $0x30] sm:$0xf]
    %v345 = vld [vmem:[%s2 + $0x34] sm:$0xf]
    %v346 = vld [vmem:[%s2 + $0x38] sm:$0xf]
    %v347 = vld [vmem:[%s2 + $0x3c] sm:$0xf]
    %v348 = vunpack.c.l.bf16 %v332
    %v349 = vunpack.c.l.bf16 %v333
    %v350 = vunpack.c.l.bf16 %v334
    %v351 = vunpack.c.l.bf16 %v335
    %v352 = vunpack.c.l.bf16 %v336
    %v353 = vunpack.c.l.bf16 %v337
    %v354 = vunpack.c.l.bf16 %v338
    %v355 = vunpack.c.l.bf16 %v339
    %v356 = vunpack.c.l.bf16 %v340
    %v357 = vunpack.c.l.bf16 %v341
    %v358 = vunpack.c.l.bf16 %v342
    %v359 = vunpack.c.l.bf16 %v343
    %v360 = vunpack.c.l.bf16 %v344
    %v361 = vunpack.c.l.bf16 %v345
    %v362 = vunpack.c.l.bf16 %v346
    %v363 = vunpack.c.l.bf16 %v347
    %v364 = vadd.f32 %v316, %v348
    %v365 = vadd.f32 %v317, %v349
    %v366 = vadd.f32 %v318, %v350
    %v367 = vadd.f32 %v319, %v351
    %v368 = vadd.f32 %v320, %v352
    %v369 = vadd.f32 %v321, %v353
    %v370 = vadd.f32 %v322, %v354
    %v371 = vadd.f32 %v323, %v355
    %v372 = vadd.f32 %v324, %v356
    %v373 = vadd.f32 %v325, %v357
    %v374 = vadd.f32 %v326, %v358
    %v375 = vadd.f32 %v327, %v359
    %v376 = vadd.f32 %v328, %v360
    %v377 = vadd.f32 %v329, %v361
    %v378 = vadd.f32 %v330, %v362
    %v379 = vadd.f32 %v331, %v363
    %v380 = vmul.f32 %v364, 0.5
    %v381 = vmul.f32 %v365, 0.5
    %v382 = vmul.f32 %v366, 0.5
    %v383 = vmul.f32 %v367, 0.5
    %v384 = vmul.f32 %v368, 0.5
    %v385 = vmul.f32 %v369, 0.5
    %v386 = vmul.f32 %v370, 0.5
    %v387 = vmul.f32 %v371, 0.5
    %v388 = vmul.f32 %v372, 0.5
    %v389 = vmul.f32 %v373, 0.5
    %v390 = vmul.f32 %v374, 0.5
    %v391 = vmul.f32 %v375, 0.5
    %v392 = vmul.f32 %v376, 0.5
    %v393 = vmul.f32 %v377, 0.5
    %v394 = vmul.f32 %v378, 0.5
    %v395 = vmul.f32 %v379, 0.5
    %v396 = vmul.f32 %v364, 0.70710677
    %v397 = vmul.f32 %v365, 0.70710677
    %v398 = vmul.f32 %v366, 0.70710677
    %v399 = vmul.f32 %v367, 0.70710677
    %v400 = vmul.f32 %v368, 0.70710677
    %v401 = vmul.f32 %v369, 0.70710677
    %v402 = vmul.f32 %v370, 0.70710677
    %v403 = vmul.f32 %v371, 0.70710677
    %v404 = vmul.f32 %v372, 0.70710677
    %v405 = vmul.f32 %v373, 0.70710677
    %v406 = vmul.f32 %v374, 0.70710677
    %v407 = vmul.f32 %v375, 0.70710677
    %v408 = vmul.f32 %v376, 0.70710677
    %v409 = vmul.f32 %v377, 0.70710677
    %v410 = vmul.f32 %v378, 0.70710677
    %v411 = vmul.f32 %v379, 0.70710677
    %v412 = verf.f32.pop %v396
    %v413 = verf.f32.pop %v397
    %v414 = verf.f32.pop %v398
    %v415 = verf.f32.pop %v399
    %v416 = verf.f32.pop %v400
    %v417 = verf.f32.pop %v401
    %v418 = verf.f32.pop %v402
    %v419 = verf.f32.pop %v403
    %v420 = verf.f32.pop %v404
    %v421 = verf.f32.pop %v405
    %v422 = verf.f32.pop %v406
    %v423 = verf.f32.pop %v407
    %v424 = verf.f32.pop %v408
    %v425 = verf.f32.pop %v409
    %v426 = verf.f32.pop %v410
    %v427 = verf.f32.pop %v411
    %v428 = vadd.f32 %v412, 1.0
    %v429 = vadd.f32 %v413, 1.0
    %v430 = vadd.f32 %v414, 1.0
    %v431 = vadd.f32 %v415, 1.0
    %v432 = vadd.f32 %v416, 1.0
    %v433 = vadd.f32 %v417, 1.0
    %v434 = vadd.f32 %v418, 1.0
    %v435 = vadd.f32 %v419, 1.0
    %v436 = vadd.f32 %v420, 1.0
    %v437 = vadd.f32 %v421, 1.0
    %v438 = vadd.f32 %v422, 1.0
    %v439 = vadd.f32 %v423, 1.0
    %v440 = vadd.f32 %v424, 1.0
    %v441 = vadd.f32 %v425, 1.0
    %v442 = vadd.f32 %v426, 1.0
    %v443 = vadd.f32 %v427, 1.0
    %v444 = vmul.f32 %v380, %v428
    %v445 = vmul.f32 %v381, %v429
    %v446 = vmul.f32 %v382, %v430
    %v447 = vmul.f32 %v383, %v431
    %v448 = vmul.f32 %v384, %v432
    %v449 = vmul.f32 %v385, %v433
    %v450 = vmul.f32 %v386, %v434
    %v451 = vmul.f32 %v387, %v435
    %v452 = vmul.f32 %v388, %v436
    %v453 = vmul.f32 %v389, %v437
    %v454 = vmul.f32 %v390, %v438
    %v455 = vmul.f32 %v391, %v439
    %v456 = vmul.f32 %v392, %v440
    %v457 = vmul.f32 %v393, %v441
    %v458 = vmul.f32 %v394, %v442
    %v459 = vmul.f32 %v395, %v443
    %460 = vst [vmem:[%s3] sm:$0xff] %v444
    %461 = vst [vmem:[%s3 + $0x8] sm:$0xff] %v445
    %462 = vst [vmem:[%s3 + $0x10] sm:$0xff] %v446
    %463 = vst [vmem:[%s3 + $0x18] sm:$0xff] %v447
    %464 = vst [vmem:[%s3 + $0x20] sm:$0xff] %v448
    %465 = vst [vmem:[%s3 + $0x28] sm:$0xff] %v449
    %466 = vst [vmem:[%s3 + $0x30] sm:$0xff] %v450
    %467 = vst [vmem:[%s3 + $0x38] sm:$0xff] %v451
    %468 = vst [vmem:[%s3 + $0x40] sm:$0xff] %v452
    %469 = vst [vmem:[%s3 + $0x48] sm:$0xff] %v453
    %470 = vst [vmem:[%s3 + $0x50] sm:$0xff] %v454
    %471 = vst [vmem:[%s3 + $0x58] sm:$0xff] %v455
    %472 = vst [vmem:[%s3 + $0x60] sm:$0xff] %v456
    %473 = vst [vmem:[%s3 + $0x68] sm:$0xff] %v457
    %474 = vst [vmem:[%s3 + $0x70] sm:$0xff] %v458
    %475 = vst [vmem:[%s3 + $0x78] sm:$0xff] %v459
  $region21: #{graph_conv_model.7} parent=0 // pred_fallthru
    _
  // Predicated region
  $region22: #{graph_conv_model.7} parent=0 // pred_check
    _
  $region23: #{graph_conv_model.7} parent=0 // pred_check_branch
    %477 = sbr.rel (0) target = $region25
  $region24: #{graph_conv_model.7} parent=0 // pred_region
    _
  $region25: #{graph_conv_model.7} parent=0 // pred_fallthru
    _
  // Predicated region
  $region26: #{graph_conv_model.7} parent=0 // pred_check
    _
  $region27: #{graph_conv_model.7} parent=0 // pred_check_branch
    %479 = sbr.rel (0) target = $region29
  $region28: #{graph_conv_model.7} parent=0 // pred_region
    _
  $region29: #{graph_conv_model.7} parent=0 // pred_fallthru
    _

// kernel: graph_conv_model.4
$region0: #{graph_conv_model.4}
  #allocation0 [shape = 'u32[]', space=smem, size = 0x4, offset = 0x4, fixed_abs, tag = 'smem constant byte address 0x4 - core index']
  #allocation1 [shape = 'u32[144,128]{1,0:T(1,128)}', space=vmem, size = 0x12000, scoped, tag = 'internal scratch']
  #allocation2 [shape = 'f32[128,128]{1,0:T(8,128)}', space=vmem, size = 0x10000, scoped, tag = 'scratch operand']
  %s0 = inlined_call_operand.vmem [shape: bf16[128,128], index: 0, kind: input, shape index: {}]
  %s1 = inlined_call_operand.vmem [shape: bf16[128,128], index: 1, kind: input, shape index: {}]
  %s2 = inlined_call_operand.vmem [shape: bf16[128,128], index: 2, kind: input, shape index: {}]
  %s3 = inlined_call_operand.vmem [shape: bf16[128,128], index: 3, kind: output, shape index: {}]
  %s4 = sld [smem:[#allocation0]]
  $region30: #{graph_conv_model.4} parent=0
    _
  %s6 = ssub.s32 1, %s4
  %s7 = scalar_select 0, %s6, %s4
  // Predicated region
  $region2: #{graph_conv_model.4} parent=0 // pred_check
    _
  $region3: #{graph_conv_model.4} parent=0 // pred_check_branch
    %9 = sbr.rel (0) target = $region5
  $region4: #{graph_conv_model.4} parent=0 // pred_region
    _
  $region5: #{graph_conv_model.4} parent=0 // pred_fallthru
    _
  // Predicated region
  $region6: #{graph_conv_model.4} parent=0 // pred_check
    _
  $region7: #{graph_conv_model.4} parent=0 // pred_check_branch
    %11 = sbr.rel (0) target = $region9
  $region8: #{graph_conv_model.4} parent=0 // pred_region
    _
  $region9: #{graph_conv_model.4} parent=0 // pred_fallthru
    _
  // Predicated region
  $region10: #{graph_conv_model.4} parent=0 // pred_check
    _
  $region11: #{graph_conv_model.4} parent=0 // pred_check_branch
    %13 = sbr.rel (0) target = $region13
  $region12: #{graph_conv_model.4} parent=0 // pred_region
    _
  $region13: #{graph_conv_model.4} parent=0 // pred_fallthru
    _
  %p15 = scmp.eq.s32.totalorder 0, 0
  // Predicated region
  $region14: #{graph_conv_model.4} parent=0 // pred_check
    %p16 = pneg %p15
  $region15: #{graph_conv_model.4} parent=0 // pred_check_branch
    %18 = sbr.rel (%p16) target = $region17
  $region16: #{graph_conv_model.4} parent=0 // pred_region
    %19 = vst [vmem:[#allocation2] sm:$0xff] 0.0
    %20 = vst [vmem:[#allocation2 + $0x8] sm:$0xff] 0.0
    %21 = vst [vmem:[#allocation2 + $0x10] sm:$0xff] 0.0
    %22 = vst [vmem:[#allocation2 + $0x18] sm:$0xff] 0.0
    %23 = vst [vmem:[#allocation2 + $0x20] sm:$0xff] 0.0
    %24 = vst [vmem:[#allocation2 + $0x28] sm:$0xff] 0.0
    %25 = vst [vmem:[#allocation2 + $0x30] sm:$0xff] 0.0
    %26 = vst [vmem:[#allocation2 + $0x38] sm:$0xff] 0.0
    %27 = vst [vmem:[#allocation2 + $0x40] sm:$0xff] 0.0
    %28 = vst [vmem:[#allocation2 + $0x48] sm:$0xff] 0.0
    %29 = vst [vmem:[#allocation2 + $0x50] sm:$0xff] 0.0
    %30 = vst [vmem:[#allocation2 + $0x58] sm:$0xff] 0.0
    %31 = vst [vmem:[#allocation2 + $0x60] sm:$0xff] 0.0
    %32 = vst [vmem:[#allocation2 + $0x68] sm:$0xff] 0.0
    %33 = vst [vmem:[#allocation2 + $0x70] sm:$0xff] 0.0
    %34 = vst [vmem:[#allocation2 + $0x78] sm:$0xff] 0.0
  $region17: #{graph_conv_model.4} parent=0 // pred_fallthru
    _
  %s35 = smul.u32 0, 128
  %v36 = vld [vmem:[#allocation2] sm:$0xff]
  %v37 = vld [vmem:[#allocation2 + $0x8] sm:$0xff]
  %v38 = vld [vmem:[#allocation2 + $0x10] sm:$0xff]
  %v39 = vld [vmem:[#allocation2 + $0x18] sm:$0xff]
  %v40 = vld [vmem:[#allocation2 + $0x20] sm:$0xff]
  %v41 = vld [vmem:[#allocation2 + $0x28] sm:$0xff]
  %v42 = vld [vmem:[#allocation2 + $0x30] sm:$0xff]
  %v43 = vld [vmem:[#allocation2 + $0x38] sm:$0xff]
  %v44 = vld [vmem:[#allocation2 + $0x40] sm:$0xff]
  %v45 = vld [vmem:[#allocation2 + $0x48] sm:$0xff]
  %v46 = vld [vmem:[#allocation2 + $0x50] sm:$0xff]
  %v47 = vld [vmem:[#allocation2 + $0x58] sm:$0xff]
  %v48 = vld [vmem:[#allocation2 + $0x60] sm:$0xff]
  %v49 = vld [vmem:[#allocation2 + $0x68] sm:$0xff]
  %v50 = vld [vmem:[#allocation2 + $0x70] sm:$0xff]
  %v51 = vld [vmem:[#allocation2 + $0x78] sm:$0xff]
  %v52 = vld [vmem:[%s0] sm:$0xf]
  %v53 = vld [vmem:[%s0 + $0x4] sm:$0xf]
  %v54 = vld [vmem:[%s0 + $0x8] sm:$0xf]
  %v55 = vld [vmem:[%s0 + $0xc] sm:$0xf]
  %v56 = vld [vmem:[%s0 + $0x10] sm:$0xf]
  %v57 = vld [vmem:[%s0 + $0x14] sm:$0xf]
  %v58 = vld [vmem:[%s0 + $0x18] sm:$0xf]
  %v59 = vld [vmem:[%s0 + $0x1c] sm:$0xf]
  %v60 = vld [vmem:[%s0 + $0x20] sm:$0xf]
  %v61 = vld [vmem:[%s0 + $0x24] sm:$0xf]
  %v62 = vld [vmem:[%s0 + $0x28] sm:$0xf]
  %v63 = vld [vmem:[%s0 + $0x2c] sm:$0xf]
  %v64 = vld [vmem:[%s0 + $0x30] sm:$0xf]
  %v65 = vld [vmem:[%s0 + $0x34] sm:$0xf]
  %v66 = vld [vmem:[%s0 + $0x38] sm:$0xf]
  %v67 = vld [vmem:[%s0 + $0x3c] sm:$0xf]
  %s68 = sshra.s32 %s35, 3
  %s69 = sand.u32 %s35, 7
  %s70 = smul.addr %s68, 4
  %s71 = scalar_lea.vmem %s1, %s70
  %v72 = vld [vmem:[%s71] sm:$0xf]
  %v73 = vld [vmem:[%s71 + $0x4] sm:$0xf]
  %v74 = vld [vmem:[%s71 + $0x8] sm:$0xf]
  %v75 = vld [vmem:[%s71 + $0xc] sm:$0xf]
  %v76 = vld [vmem:[%s71 + $0x10] sm:$0xf]
  %v77 = vld [vmem:[%s71 + $0x14] sm:$0xf]
  %v78 = vld [vmem:[%s71 + $0x18] sm:$0xf]
  %v79 = vld [vmem:[%s71 + $0x1c] sm:$0xf]
  %v80 = vld [vmem:[%s71 + $0x20] sm:$0xf]
  %v81 = vld [vmem:[%s71 + $0x24] sm:$0xf]
  %v82 = vld [vmem:[%s71 + $0x28] sm:$0xf]
  %v83 = vld [vmem:[%s71 + $0x2c] sm:$0xf]
  %v84 = vld [vmem:[%s71 + $0x30] sm:$0xf]
  %v85 = vld [vmem:[%s71 + $0x34] sm:$0xf]
  %v86 = vld [vmem:[%s71 + $0x38] sm:$0xf]
  %v87 = vld [vmem:[%s71 + $0x3c] sm:$0xf]
  %v104 = vunpack.c.l.b16 %v52
  %v105 = vunpack.c.l.b16 %v53
  %v106 = vunpack.c.l.b16 %v54
  %v107 = vunpack.c.l.b16 %v55
  %v108 = vunpack.c.l.b16 %v56
  %v109 = vunpack.c.l.b16 %v57
  %v110 = vunpack.c.l.b16 %v58
  %v111 = vunpack.c.l.b16 %v59
  %v112 = vunpack.c.l.b16 %v60
  %v113 = vunpack.c.l.b16 %v61
  %v114 = vunpack.c.l.b16 %v62
  %v115 = vunpack.c.l.b16 %v63
  %v116 = vunpack.c.l.b16 %v64
  %v117 = vunpack.c.l.b16 %v65
  %v118 = vunpack.c.l.b16 %v66
  %v119 = vunpack.c.l.b16 %v67
  %v120 = vpack.c.b16 %v105, %v104
  %v121 = vpack.c.b16 %v107, %v106
  %v122 = vpack.c.b16 %v109, %v108
  %v123 = vpack.c.b16 %v111, %v110
  %v124 = vpack.c.b16 %v113, %v112
  %v125 = vpack.c.b16 %v115, %v114
  %v126 = vpack.c.b16 %v117, %v116
  %v127 = vpack.c.b16 %v119, %v118
  %v152 = vunpack.c.l.b16 %v72
  %v153 = vunpack.c.l.b16 %v73
  %v154 = vunpack.c.l.b16 %v74
  %v155 = vunpack.c.l.b16 %v75
  %v156 = vunpack.c.l.b16 %v76
  %v157 = vunpack.c.l.b16 %v77
  %v158 = vunpack.c.l.b16 %v78
  %v159 = vunpack.c.l.b16 %v79
  %v160 = vunpack.c.l.b16 %v80
  %v161 = vunpack.c.l.b16 %v81
  %v162 = vunpack.c.l.b16 %v82
  %v163 = vunpack.c.l.b16 %v83
  %v164 = vunpack.c.l.b16 %v84
  %v165 = vunpack.c.l.b16 %v85
  %v166 = vunpack.c.l.b16 %v86
  %v167 = vunpack.c.l.b16 %v87
  %v168 = vpack.c.b16 %v153, %v152
  %v169 = vpack.c.b16 %v155, %v154
  %v170 = vpack.c.b16 %v157, %v156
  %v171 = vpack.c.b16 %v159, %v158
  %v172 = vpack.c.b16 %v161, %v160
  %v173 = vpack.c.b16 %v163, %v162
  %v174 = vpack.c.b16 %v165, %v164
  %v175 = vpack.c.b16 %v167, %v166
  %184 = vmatprep.subr.bf16.mxu0 0
  %185 = vmatpush1.bf16.msra.mxu0 %v168
  %186 = vmatprep.subr.bf16.mxu0 0
  %187 = vmatpush1.bf16.msra.mxu0 %v169
  %188 = vmatprep.subr.bf16.mxu0 0
  %189 = vmatpush1.bf16.msra.mxu0 %v170
  %190 = vmatprep.subr.bf16.mxu0 0
  %191 = vmatpush1.bf16.msra.mxu0 %v171
  %192 = vmatprep.subr.bf16.mxu0 0
  %193 = vmatpush1.bf16.msra.mxu0 %v172
  %194 = vmatprep.subr.bf16.mxu0 0
  %195 = vmatpush1.bf16.msra.mxu0 %v173
  %196 = vmatprep.subr.bf16.mxu0 0
  %197 = vmatpush1.bf16.msra.mxu0 %v174
  %198 = vmatprep.subr.bf16.mxu0 0
  %199 = vmatpush1.bf16.msra.mxu0 %v175
  %200 = vmatprep.subr.bf16.mxu0 0
  %201 = vmatpush1.bf16.msra.mxu0 0
  %202 = vmatprep.subr.bf16.mxu0 0
  %203 = vmatpush1.bf16.msra.mxu0 0
  %204 = vmatprep.subr.bf16.mxu0 0
  %205 = vmatpush1.bf16.msra.mxu0 0
  %206 = vmatprep.subr.bf16.mxu0 0
  %207 = vmatpush1.bf16.msra.mxu0 0
  %208 = vmatprep.subr.bf16.mxu0 0
  %209 = vmatpush1.bf16.msra.mxu0 0
  %210 = vmatprep.subr.bf16.mxu0 0
  %211 = vmatpush1.bf16.msra.mxu0 0
  %212 = vmatprep.subr.bf16.mxu0 0
  %213 = vmatpush1.bf16.msra.mxu0 0
  %214 = vmatprep.subr.bf16.mxu0 0
  %215 = vmatpush1.bf16.msra.mxu0 0
  %216 = vmatprep.mubr.bf16.mxu0 0
  %217 = vmatmul.mubr.bf16.gmra.mrb[0].mxu0 %v120
  %v218 = vpop.f32.mrb[0].mxu0
  %v219 = vadd.f32 0.0, %v218
  %v220 = vpop.f32.mrb[0].mxu0
  %v221 = vpop.f32.mrb[0].mxu0
  %v222 = vadd.f32 0.0, %v221
  %v223 = vpop.f32.mrb[0].mxu0
  %224 = vmatprep.mubr.bf16.mxu0 0
  %225 = vmatmul.mubr.bf16.gmra.mrb[0].mxu0 %v121
  %v226 = vpop.f32.mrb[0].mxu0
  %v227 = vadd.f32 0.0, %v226
  %v228 = vpop.f32.mrb[0].mxu0
  %v229 = vpop.f32.mrb[0].mxu0
  %v230 = vadd.f32 0.0, %v229
  %v231 = vpop.f32.mrb[0].mxu0
  %232 = vmatprep.mubr.bf16.mxu0 0
  %233 = vmatmul.mubr.bf16.gmra.mrb[0].mxu0 %v122
  %v234 = vpop.f32.mrb[0].mxu0
  %v235 = vadd.f32 0.0, %v234
  %v236 = vpop.f32.mrb[0].mxu0
  %v237 = vpop.f32.mrb[0].mxu0
  %v238 = vadd.f32 0.0, %v237
  %v239 = vpop.f32.mrb[0].mxu0
  %240 = vmatprep.mubr.bf16.mxu0 0
  %241 = vmatmul.mubr.bf16.gmra.mrb[0].mxu0 %v123
  %v242 = vpop.f32.mrb[0].mxu0
  %v243 = vadd.f32 0.0, %v242
  %v244 = vpop.f32.mrb[0].mxu0
  %v245 = vpop.f32.mrb[0].mxu0
  %v246 = vadd.f32 0.0, %v245
  %v247 = vpop.f32.mrb[0].mxu0
  %248 = vmatprep.mubr.bf16.mxu0 0
  %249 = vmatmul.mubr.bf16.gmra.mrb[0].mxu0 %v124
  %v250 = vpop.f32.mrb[0].mxu0
  %v251 = vadd.f32 0.0, %v250
  %v252 = vpop.f32.mrb[0].mxu0
  %v253 = vpop.f32.mrb[0].mxu0
  %v254 = vadd.f32 0.0, %v253
  %v255 = vpop.f32.mrb[0].mxu0
  %256 = vmatprep.mubr.bf16.mxu0 0
  %257 = vmatmul.mubr.bf16.gmra.mrb[0].mxu0 %v125
  %v258 = vpop.f32.mrb[0].mxu0
  %v259 = vadd.f32 0.0, %v258
  %v260 = vpop.f32.mrb[0].mxu0
  %v261 = vpop.f32.mrb[0].mxu0
  %v262 = vadd.f32 0.0, %v261
  %v263 = vpop.f32.mrb[0].mxu0
  %264 = vmatprep.mubr.bf16.mxu0 0
  %265 = vmatmul.mubr.bf16.gmra.mrb[0].mxu0 %v126
  %v266 = vpop.f32.mrb[0].mxu0
  %v267 = vadd.f32 0.0, %v266
  %v268 = vpop.f32.mrb[0].mxu0
  %v269 = vpop.f32.mrb[0].mxu0
  %v270 = vadd.f32 0.0, %v269
  %v271 = vpop.f32.mrb[0].mxu0
  %272 = vmatprep.mubr.bf16.mxu0 0
  %273 = vmatmul.mubr.bf16.gmra.mrb[0].mxu0 %v127
  %v274 = vpop.f32.mrb[0].mxu0
  %v275 = vadd.f32 0.0, %v274
  %v276 = vpop.f32.mrb[0].mxu0
  %v277 = vpop.f32.mrb[0].mxu0
  %v278 = vadd.f32 0.0, %v277
  %v279 = vpop.f32.mrb[0].mxu0
  %280 = vdwg.mxu0
  %v281 = vadd.f32 %v36, %v219
  %v282 = vadd.f32 %v37, %v222
  %v283 = vadd.f32 %v38, %v227
  %v284 = vadd.f32 %v39, %v230
  %v285 = vadd.f32 %v40, %v235
  %v286 = vadd.f32 %v41, %v238
  %v287 = vadd.f32 %v42, %v243
  %v288 = vadd.f32 %v43, %v246
  %v289 = vadd.f32 %v44, %v251
  %v290 = vadd.f32 %v45, %v254
  %v291 = vadd.f32 %v46, %v259
  %v292 = vadd.f32 %v47, %v262
  %v293 = vadd.f32 %v48, %v267
  %v294 = vadd.f32 %v49, %v270
  %v295 = vadd.f32 %v50, %v275
  %v296 = vadd.f32 %v51, %v278
  %297 = vst [vmem:[#allocation2] sm:$0xff] %v281
  %298 = vst [vmem:[#allocation2 + $0x8] sm:$0xff] %v282
  %299 = vst [vmem:[#allocation2 + $0x10] sm:$0xff] %v283
  %300 = vst [vmem:[#allocation2 + $0x18] sm:$0xff] %v284
  %301 = vst [vmem:[#allocation2 + $0x20] sm:$0xff] %v285
  %302 = vst [vmem:[#allocation2 + $0x28] sm:$0xff] %v286
  %303 = vst [vmem:[#allocation2 + $0x30] sm:$0xff] %v287
  %304 = vst [vmem:[#allocation2 + $0x38] sm:$0xff] %v288
  %305 = vst [vmem:[#allocation2 + $0x40] sm:$0xff] %v289
  %306 = vst [vmem:[#allocation2 + $0x48] sm:$0xff] %v290
  %307 = vst [vmem:[#allocation2 + $0x50] sm:$0xff] %v291
  %308 = vst [vmem:[#allocation2 + $0x58] sm:$0xff] %v292
  %309 = vst [vmem:[#allocation2 + $0x60] sm:$0xff] %v293
  %310 = vst [vmem:[#allocation2 + $0x68] sm:$0xff] %v294
  %311 = vst [vmem:[#allocation2 + $0x70] sm:$0xff] %v295
  %312 = vst [vmem:[#allocation2 + $0x78] sm:$0xff] %v296
  // Predicated region
  $region18: #{graph_conv_model.4} parent=0 // pred_check
    %p313 = pneg %p15
  $region19: #{graph_conv_model.4} parent=0 // pred_check_branch
    %315 = sbr.rel (%p313) target = $region21
  $region20: #{graph_conv_model.4} parent=0 // pred_region
    %v316 = vld [vmem:[#allocation2] sm:$0xff]
    %v317 = vld [vmem:[#allocation2 + $0x8] sm:$0xff]
    %v318 = vld [vmem:[#allocation2 + $0x10] sm:$0xff]
    %v319 = vld [vmem:[#allocation2 + $0x18] sm:$0xff]
    %v320 = vld [vmem:[#allocation2 + $0x20] sm:$0xff]
    %v321 = vld [vmem:[#allocation2 + $0x28] sm:$0xff]
    %v322 = vld [vmem:[#allocation2 + $0x30] sm:$0xff]
    %v323 = vld [vmem:[#allocation2 + $0x38] sm:$0xff]
    %v324 = vld [vmem:[#allocation2 + $0x40] sm:$0xff]
    %v325 = vld [vmem:[#allocation2 + $0x48] sm:$0xff]
    %v326 = vld [vmem:[#allocation2 + $0x50] sm:$0xff]
    %v327 = vld [vmem:[#allocation2 + $0x58] sm:$0xff]
    %v328 = vld [vmem:[#allocation2 + $0x60] sm:$0xff]
    %v329 = vld [vmem:[#allocation2 + $0x68] sm:$0xff]
    %v330 = vld [vmem:[#allocation2 + $0x70] sm:$0xff]
    %v331 = vld [vmem:[#allocation2 + $0x78] sm:$0xff]
    %v332 = vld [vmem:[%s2] sm:$0xf]
    %v333 = vld [vmem:[%s2 + $0x4] sm:$0xf]
    %v334 = vld [vmem:[%s2 + $0x8] sm:$0xf]
    %v335 = vld [vmem:[%s2 + $0xc] sm:$0xf]
    %v336 = vld [vmem:[%s2 + $0x10] sm:$0xf]
    %v337 = vld [vmem:[%s2 + $0x14] sm:$0xf]
    %v338 = vld [vmem:[%s2 + $0x18] sm:$0xf]
    %v339 = vld [vmem:[%s2 + $0x1c] sm:$0xf]
    %v340 = vld [vmem:[%s2 + $0x20] sm:$0xf]
    %v341 = vld [vmem:[%s2 + $0x24] sm:$0xf]
    %v342 = vld [vmem:[%s2 + $0x28] sm:$0xf]
    %v343 = vld [vmem:[%s2 + $0x2c] sm:$0xf]
    %v344 = vld [vmem:[%s2 + $0x30] sm:$0xf]
    %v345 = vld [vmem:[%s2 + $0x34] sm:$0xf]
    %v346 = vld [vmem:[%s2 + $0x38] sm:$0xf]
    %v347 = vld [vmem:[%s2 + $0x3c] sm:$0xf]
    %v348 = vunpack.c.l.bf16 %v332
    %v349 = vunpack.c.l.bf16 %v333
    %v350 = vunpack.c.l.bf16 %v334
    %v351 = vunpack.c.l.bf16 %v335
    %v352 = vunpack.c.l.bf16 %v336
    %v353 = vunpack.c.l.bf16 %v337
    %v354 = vunpack.c.l.bf16 %v338
    %v355 = vunpack.c.l.bf16 %v339
    %v356 = vunpack.c.l.bf16 %v340
    %v357 = vunpack.c.l.bf16 %v341
    %v358 = vunpack.c.l.bf16 %v342
    %v359 = vunpack.c.l.bf16 %v343
    %v360 = vunpack.c.l.bf16 %v344
    %v361 = vunpack.c.l.bf16 %v345
    %v362 = vunpack.c.l.bf16 %v346
    %v363 = vunpack.c.l.bf16 %v347
    %v364 = vadd.f32 %v316, %v348
    %v365 = vadd.f32 %v317, %v349
    %v366 = vadd.f32 %v318, %v350
    %v367 = vadd.f32 %v319, %v351
    %v368 = vadd.f32 %v320, %v352
    %v369 = vadd.f32 %v321, %v353
    %v370 = vadd.f32 %v322, %v354
    %v371 = vadd.f32 %v323, %v355
    %v372 = vadd.f32 %v324, %v356
    %v373 = vadd.f32 %v325, %v357
    %v374 = vadd.f32 %v326, %v358
    %v375 = vadd.f32 %v327, %v359
    %v376 = vadd.f32 %v328, %v360
    %v377 = vadd.f32 %v329, %v361
    %v378 = vadd.f32 %v330, %v362
    %v379 = vadd.f32 %v331, %v363
    %v380 = vmul.f32 %v364, 0.5
    %v381 = vmul.f32 %v365, 0.5
    %v382 = vmul.f32 %v366, 0.5
    %v383 = vmul.f32 %v367, 0.5
    %v384 = vmul.f32 %v368, 0.5
    %v385 = vmul.f32 %v369, 0.5
    %v386 = vmul.f32 %v370, 0.5
    %v387 = vmul.f32 %v371, 0.5
    %v388 = vmul.f32 %v372, 0.5
    %v389 = vmul.f32 %v373, 0.5
    %v390 = vmul.f32 %v374, 0.5
    %v391 = vmul.f32 %v375, 0.5
    %v392 = vmul.f32 %v376, 0.5
    %v393 = vmul.f32 %v377, 0.5
    %v394 = vmul.f32 %v378, 0.5
    %v395 = vmul.f32 %v379, 0.5
    %v396 = vmul.f32 %v364, 0.70710677
    %v397 = vmul.f32 %v365, 0.70710677
    %v398 = vmul.f32 %v366, 0.70710677
    %v399 = vmul.f32 %v367, 0.70710677
    %v400 = vmul.f32 %v368, 0.70710677
    %v401 = vmul.f32 %v369, 0.70710677
    %v402 = vmul.f32 %v370, 0.70710677
    %v403 = vmul.f32 %v371, 0.70710677
    %v404 = vmul.f32 %v372, 0.70710677
    %v405 = vmul.f32 %v373, 0.70710677
    %v406 = vmul.f32 %v374, 0.70710677
    %v407 = vmul.f32 %v375, 0.70710677
    %v408 = vmul.f32 %v376, 0.70710677
    %v409 = vmul.f32 %v377, 0.70710677
    %v410 = vmul.f32 %v378, 0.70710677
    %v411 = vmul.f32 %v379, 0.70710677
    %v412 = verf.f32.pop %v396
    %v413 = verf.f32.pop %v397
    %v414 = verf.f32.pop %v398
    %v415 = verf.f32.pop %v399
    %v416 = verf.f32.pop %v400
    %v417 = verf.f32.pop %v401
    %v418 = verf.f32.pop %v402
    %v419 = verf.f32.pop %v403
    %v420 = verf.f32.pop %v404
    %v421 = verf.f32.pop %v405
    %v422 = verf.f32.pop %v406
    %v423 = verf.f32.pop %v407
    %v424 = verf.f32.pop %v408
    %v425 = verf.f32.pop %v409
    %v426 = verf.f32.pop %v410
    %v427 = verf.f32.pop %v411
    %v428 = vadd.f32 %v412, 1.0
    %v429 = vadd.f32 %v413, 1.0
    %v430 = vadd.f32 %v414, 1.0
    %v431 = vadd.f32 %v415, 1.0
    %v432 = vadd.f32 %v416, 1.0
    %v433 = vadd.f32 %v417, 1.0
    %v434 = vadd.f32 %v418, 1.0
    %v435 = vadd.f32 %v419, 1.0
    %v436 = vadd.f32 %v420, 1.0
    %v437 = vadd.f32 %v421, 1.0
    %v438 = vadd.f32 %v422, 1.0
    %v439 = vadd.f32 %v423, 1.0
    %v440 = vadd.f32 %v424, 1.0
    %v441 = vadd.f32 %v425, 1.0
    %v442 = vadd.f32 %v426, 1.0
    %v443 = vadd.f32 %v427, 1.0
    %v444 = vmul.f32 %v380, %v428
    %v445 = vmul.f32 %v381, %v429
    %v446 = vmul.f32 %v382, %v430
    %v447 = vmul.f32 %v383, %v431
    %v448 = vmul.f32 %v384, %v432
    %v449 = vmul.f32 %v385, %v433
    %v450 = vmul.f32 %v386, %v434
    %v451 = vmul.f32 %v387, %v435
    %v452 = vmul.f32 %v388, %v436
    %v453 = vmul.f32 %v389, %v437
    %v454 = vmul.f32 %v390, %v438
    %v455 = vmul.f32 %v391, %v439
    %v456 = vmul.f32 %v392, %v440
    %v457 = vmul.f32 %v393, %v441
    %v458 = vmul.f32 %v394, %v442
    %v459 = vmul.f32 %v395, %v443
    %v460 = vpack.c.bf16 %v445, %v444
    %v461 = vpack.c.bf16 %v447, %v446
    %v462 = vpack.c.bf16 %v449, %v448
    %v463 = vpack.c.bf16 %v451, %v450
    %v464 = vpack.c.bf16 %v453, %v452
    %v465 = vpack.c.bf16 %v455, %v454
    %v466 = vpack.c.bf16 %v457, %v456
    %v467 = vpack.c.bf16 %v459, %v458
    %468 = vst [vmem:[%s3] sm:$0xff] %v460
    %469 = vst [vmem:[%s3 + $0x8] sm:$0xff] %v461
    %470 = vst [vmem:[%s3 + $0x10] sm:$0xff] %v462
    %471 = vst [vmem:[%s3 + $0x18] sm:$0xff] %v463
    %472 = vst [vmem:[%s3 + $0x20] sm:$0xff] %v464
    %473 = vst [vmem:[%s3 + $0x28] sm:$0xff] %v465
    %474 = vst [vmem:[%s3 + $0x30] sm:$0xff] %v466
    %475 = vst [vmem:[%s3 + $0x38] sm:$0xff] %v467
  $region21: #{graph_conv_model.4} parent=0 // pred_fallthru
    _
  // Predicated region
  $region22: #{graph_conv_model.4} parent=0 // pred_check
    _
  $region23: #{graph_conv_model.4} parent=0 // pred_check_branch
    %477 = sbr.rel (0) target = $region25
  $region24: #{graph_conv_model.4} parent=0 // pred_region
    _
  $region25: #{graph_conv_model.4} parent=0 // pred_fallthru
    _
  // Predicated region
  $region26: #{graph_conv_model.4} parent=0 // pred_check
    _
  $region27: #{graph_conv_model.4} parent=0 // pred_check_branch
    %479 = sbr.rel (0) target = $region29
  $region28: #{graph_conv_model.4} parent=0 // pred_region
    _
  $region29: #{graph_conv_model.4} parent=0 // pred_fallthru
    _

</llo_original>
